<compile_context>
chip_gen: v7x
topology: tpu7x:2x2x1
jax: 0.10.0
libtpu: 0.0.40
codegen_flags: <defaults>
</compile_context>

<pallas_src>
import numpy as np
import jax
import jax.numpy as jnp
from jax.experimental import pallas as pl
from jax.experimental.pallas import tpu as pltpu

K_IN = 8    # fc in_features
N_OUT = 2   # fc out_features
PACK_ROWS = 16  # rows 0..7: W^T, row 8: (bias - other), rows 9..15: zero pad


def _linear_sub_kernel(x_ref, p_ref, o_ref):
    # Whole problem fits in one VMEM tile: y = x @ W_kn + (bias - other).
    w = p_ref[0:K_IN, :]        # (8, 2)  pre-transposed weight
    c = p_ref[K_IN:K_IN + 1, :]  # (1, 2)  fused bias - other
    o_ref[...] = (
        jnp.dot(x_ref[...], w, preferred_element_type=jnp.float32) + c
    )


def make_linear_sub(weight, bias, other):
    """Build the fused forward.

    weight: (2, 8) PyTorch layout, bias: (2,), other: (2,) or (1, 2).
    Parameter prep happens once here on the host (numpy) — zero runtime HLO
    ops accompany the kernel dispatch.
    """
    weight = np.asarray(weight, np.float32)            # (N, K)
    bias = np.asarray(bias, np.float32).reshape(1, N_OUT)
    other = np.asarray(other, np.float32).reshape(1, N_OUT)

    packed_np = np.zeros((PACK_ROWS, N_OUT), np.float32)
    packed_np[0:K_IN, :] = weight.T                    # W^T  (K, N)
    packed_np[K_IN, :] = (bias - other)[0]             # fused bias - other
    packed = jnp.asarray(packed_np)

    vmem = pl.BlockSpec(memory_space=pltpu.MemorySpace.VMEM)

    @jax.jit
    def forward(x):
        if x.dtype != jnp.float32:
            x = x.astype(jnp.float32)
        B = x.shape[0]
        cost = pl.CostEstimate(
            flops=2 * B * K_IN * N_OUT,
            bytes_accessed=(B * K_IN + PACK_ROWS * N_OUT + B * N_OUT) * 4,
            transcendentals=0,
        )
        return pl.pallas_call(
            _linear_sub_kernel,
            out_shape=jax.ShapeDtypeStruct((B, N_OUT), jnp.float32),
            in_specs=[vmem, vmem],
            out_specs=vmem,
            cost_estimate=cost,
        )(x, packed)

    return forward


if __name__ == "__main__":
    key = jax.random.PRNGKey(0)
    kx, kw, kb, ko = jax.random.split(key, 4)

    # Input consistent with the module's `x = torch.randn(10, 8)`.
    x = jax.random.normal(kx, (10, K_IN), dtype=jnp.float32)

    # Deterministic parameter init (nn.Linear(8, 2) shapes, PyTorch layout).
    weight = jax.random.normal(kw, (N_OUT, K_IN), dtype=jnp.float32) * 0.1
    bias = jax.random.normal(kb, (N_OUT,), dtype=jnp.float32) * 0.1
    # Deterministic stand-in for the undefined global `other`.
    other = jax.random.normal(ko, (1, N_OUT), dtype=jnp.float32)

    forward = make_linear_sub(weight, bias, other)
    out = forward(x)
    jax.block_until_ready(out)

    # Reference check in plain JAX (two-op formulation, as in the module).
    ref = x @ weight.T + bias - other
    assert out.shape == (10, N_OUT)
    assert jnp.allclose(out, ref, atol=1e-5, rtol=1e-5)

    print("KERNEL_OK")
</pallas_src>

<mosaic_0001>
module attributes {stable_mosaic.version = 11 : i64} {
  func.func @_linear_sub_kernel(%arg0: memref<10x8xf32, #tpu.memory_space<vmem>>, %arg1: memref<16x2xf32, #tpu.memory_space<vmem>>, %arg2: memref<10x2xf32, #tpu.memory_space<vmem>>) attributes {dimension_semantics = [], scalar_prefetch = 0 : i64, scratch_operands = 0 : i64, tpu.core_type = #tpu.core_type<tc>} {
    %c0 = arith.constant 0 : index
    %c0_0 = arith.constant 0 : index
    %0 = vector.load %arg1[%c0, %c0_0] : memref<16x2xf32, #tpu.memory_space<vmem>>, vector<8x2xf32>
    %c8 = arith.constant 8 : index
    %c0_1 = arith.constant 0 : index
    %1 = vector.load %arg1[%c8, %c0_1] : memref<16x2xf32, #tpu.memory_space<vmem>>, vector<1x2xf32>
    %c0_2 = arith.constant 0 : index
    %c0_3 = arith.constant 0 : index
    %2 = vector.load %arg0[%c0_2, %c0_3] : memref<10x8xf32, #tpu.memory_space<vmem>>, vector<10x8xf32>
    %cst = arith.constant dense<0.000000e+00> : vector<10x2xf32>
    %3 = tpu.matmul %2, %0, %cst {dimension_numbers = #tpu.dot_dimension_numbers<[1], [0], [0], [1], [0, 0, 1, 1], [], []>} : vector<10x8xf32>, vector<8x2xf32>, vector<10x2xf32> -> vector<10x2xf32>
    %4 = vector.broadcast %1 : vector<1x2xf32> to vector<10x2xf32>
    %5 = arith.addf %3, %4 : vector<10x2xf32>
    %c0_4 = arith.constant 0 : index
    %c0_5 = arith.constant 0 : index
    %6 = vector.load %arg2[%c0_4, %c0_5] : memref<10x2xf32, #tpu.memory_space<vmem>>, vector<10x2xf32>
    tpu.vector_store %arg2[%c0_4, %c0_5], %5 {strides = array<i32>} : memref<10x2xf32, #tpu.memory_space<vmem>>, vector<10x2xf32>,
    return
  }
}

</mosaic_0001>

<llo_original>
// kernel: forward.1
$region0: #{forward.1}
  #allocation0 [shape = 'u32[]', space=smem, size = 0x4, offset = 0x4, fixed_abs, tag = 'smem constant byte address 0x4 - core index']
  #allocation1 [shape = 'u32[144,128]{1,0:T(1,128)}', space=vmem, size = 0x12000, scoped, tag = 'internal scratch']
  %s0 = inlined_call_operand.vmem [shape: f32[10,8], index: 0, kind: input, shape index: {}]
  %s1 = inlined_call_operand.vmem [shape: f32[16,2], index: 1, kind: input, shape index: {}]
  %s2 = inlined_call_operand.vmem [shape: f32[10,2], index: 2, kind: output, shape index: {}]
  %s3 = sld [smem:[#allocation0]]
  $region18: #{forward.1} parent=0
    _
  %s5 = ssub.s32 1, %s3
  %s6 = scalar_select 0, %s5, %s3
  // Predicated region
  $region2: #{forward.1} parent=0 // pred_check
    _
  $region3: #{forward.1} parent=0 // pred_check_branch
    %8 = sbr.rel (0) target = $region5
  $region4: #{forward.1} parent=0 // pred_region
    _
  $region5: #{forward.1} parent=0 // pred_fallthru
    _
  // Predicated region
  $region6: #{forward.1} parent=0 // pred_check
    _
  $region7: #{forward.1} parent=0 // pred_check_branch
    %10 = sbr.rel (0) target = $region9
  $region8: #{forward.1} parent=0 // pred_region
    _
  $region9: #{forward.1} parent=0 // pred_fallthru
    _
  %v11 = vld [vmem:[%s1] sm:$0xff]
  %v12 = vld [vmem:[%s1 + $0x8] sm:$0x1]
  %v13 = vld [vmem:[%s0] sm:$0xff]
  %v14 = vld [vmem:[%s0 + $0x8] sm:$0x3]
  %v15 = vlaneseq
  %v16 = vshrl.u32 %v15, 7
  %v17 = vsub.s32 0, %v16
  %v18 = vrot.slane %v12, %v17
  %vm19 = vcmask 64512
  %v21 = vsel %vm19, %v13, 0
  %v24 = vsel %vm19, %v14, 0
  %26 = vmatprep.subr.mxu0 0.0
  %27 = vmatpush1.msra.mxu0 %v11
  %28 = vmatprep.subr.mxu0 0.0
  %29 = vmatpush1.msra.mxu0 0.0
  %30 = vmatprep.subr.mxu0 0.0
  %31 = vmatpush1.msra.mxu0 0.0
  %32 = vmatprep.subr.mxu0 0.0
  %33 = vmatpush1.msra.mxu0 0.0
  %34 = vmatprep.subr.mxu0 0.0
  %35 = vmatpush1.msra.mxu0 0.0
  %36 = vmatprep.subr.mxu0 0.0
  %37 = vmatpush1.msra.mxu0 0.0
  %38 = vmatprep.subr.mxu0 0.0
  %39 = vmatpush1.msra.mxu0 0.0
  %40 = vmatprep.subr.mxu0 0.0
  %41 = vmatpush1.msra.mxu0 0.0
  %42 = vmatprep.subr.mxu0 0.0
  %43 = vmatpush1.msra.mxu0 0.0
  %44 = vmatprep.subr.mxu0 0.0
  %45 = vmatpush1.msra.mxu0 0.0
  %46 = vmatprep.subr.mxu0 0.0
  %47 = vmatpush1.msra.mxu0 0.0
  %48 = vmatprep.subr.mxu0 0.0
  %49 = vmatpush1.msra.mxu0 0.0
  %50 = vmatprep.subr.mxu0 0.0
  %51 = vmatpush1.msra.mxu0 0.0
  %52 = vmatprep.subr.mxu0 0.0
  %53 = vmatpush1.msra.mxu0 0.0
  %54 = vmatprep.subr.mxu0 0.0
  %55 = vmatpush1.msra.mxu0 0.0
  %56 = vmatprep.subr.mxu0 0.0
  %57 = vmatpush1.msra.mxu0 0.0
  %58 = vmatprep.subr.mxu0 0.0
  %59 = vmatpush1.msra.mxu0 0.0
  %60 = vmatprep.subr.mxu0 0.0
  %61 = vmatpush1.msra.mxu0 0.0
  %62 = vmatprep.subr.mxu0 0.0
  %63 = vmatpush1.msra.mxu0 0.0
  %64 = vmatprep.subr.mxu0 0.0
  %65 = vmatpush1.msra.mxu0 0.0
  %66 = vmatprep.subr.mxu0 0.0
  %67 = vmatpush1.msra.mxu0 0.0
  %68 = vmatprep.subr.mxu0 0.0
  %69 = vmatpush1.msra.mxu0 0.0
  %70 = vmatprep.subr.mxu0 0.0
  %71 = vmatpush1.msra.mxu0 0.0
  %72 = vmatprep.subr.mxu0 0.0
  %73 = vmatpush1.msra.mxu0 0.0
  %74 = vmatprep.subr.mxu0 0.0
  %75 = vmatpush1.msra.mxu0 0.0
  %76 = vmatprep.subr.mxu0 0.0
  %77 = vmatpush1.msra.mxu0 0.0
  %78 = vmatprep.subr.mxu0 0.0
  %79 = vmatpush1.msra.mxu0 0.0
  %80 = vmatprep.subr.mxu0 0.0
  %81 = vmatpush1.msra.mxu0 0.0
  %82 = vmatprep.subr.mxu0 0.0
  %83 = vmatpush1.msra.mxu0 0.0
  %84 = vmatprep.subr.mxu0 0.0
  %85 = vmatpush1.msra.mxu0 0.0
  %86 = vmatprep.subr.mxu0 0.0
  %87 = vmatpush1.msra.mxu0 0.0
  %88 = vmatprep.subr.mxu0 0.0
  %89 = vmatpush1.msra.mxu0 0.0
  %90 = vmatprep.mubr.f32.mxu0 0.0
  %91 = vmatmul.mubr.f32.gmra.mrb[0].mxu0 %v21
  %v92 = vpop.f32.mrb[0].mxu0
  %v93 = vadd.f32 %v18, %v92
  %v94 = vpop.f32.mrb[0].mxu0
  %95 = vmatprep.mubr.f32.mxu0 0.0
  %96 = vmatmul.mubr.f32.gmra.mrb[0].mxu0 %v24
  %v97 = vpop.f32.mrb[0].mxu0
  %v98 = vadd.f32 %v18, %v97
  %v99 = vpop.f32.mrb[0].mxu0
  %100 = vdwg.mxu0
  %vm101 = vcmask 15360
  %102 = vst.msk [vmem:[%s2] sm:$0xff] %vm101, %v93
  %vm103 = vcmask 9216
  %104 = vst.msk [vmem:[%s2 + $0x8] sm:$0x3] %vm103, %v98
  // Predicated region
  $region10: #{forward.1} parent=0 // pred_check
    _
  $region11: #{forward.1} parent=0 // pred_check_branch
    %106 = sbr.rel (0) target = $region13
  $region12: #{forward.1} parent=0 // pred_region
    _
  $region13: #{forward.1} parent=0 // pred_fallthru
    _
  // Predicated region
  $region14: #{forward.1} parent=0 // pred_check
    _
  $region15: #{forward.1} parent=0 // pred_check_branch
    %108 = sbr.rel (0) target = $region17
  $region16: #{forward.1} parent=0 // pred_region
    _
  $region17: #{forward.1} parent=0 // pred_fallthru
    _

</llo_original>
